<compile_context>
chip_gen: v6e
topology: v6e:2x2x1
jax: 0.10.0
libtpu: 0.0.40
codegen_flags: <defaults>
</compile_context>

<pallas_src>
import jax
import jax.numpy as jnp
from jax.experimental import pallas as pl
from jax.experimental.pallas import tpu as pltpu


def _ffn_kernel(x_ref, w1_ref, b1_ref, w2_ref, b2_ref, o_ref):
    # x_ref : (C, T)  activation tile, pixels on the lane axis (native dtype)
    # w1_ref: (F, C)  conv1 1x1 weight (resident)
    # b1_ref: (F, 1)  f32
    # w2_ref: (C, F)  conv2 1x1 weight (resident)
    # b2_ref: (C, 1)  f32
    # o_ref : (C, T)
    h = jnp.dot(w1_ref[...], x_ref[...],
                preferred_element_type=jnp.float32)          # MXU, f32 acc
    h = jnp.maximum(h + b1_ref[...], 0.0)                    # bias + ReLU (f32)

    y = jnp.dot(w2_ref[...], h.astype(w2_ref.dtype),
                preferred_element_type=jnp.float32)          # MXU, f32 acc
    y = y + b2_ref[...]

    # Residual: re-read x_ref (cheap vld) instead of holding an f32 copy of
    # the input tile live across both matmuls (reduces vreg pressure / spills).
    o_ref[...] = (y + x_ref[...].astype(jnp.float32)).astype(o_ref.dtype)


def _round_up(x, m):
    return ((x + m - 1) // m) * m


def ffn_pallas(x_nchw, w1, b1, w2, b2, *, tile_hw=1024):
    """Fused Detr3d FFN forward (eval mode).

    Args:
      x_nchw: (N, C, H, W) input, C == embed_dims.
      w1:     (F, C) conv1 weight (torch Conv2d weight squeezed over 1x1).
      b1:     (F,)   conv1 bias.
      w2:     (C, F) conv2 weight.
      b2:     (C,)   conv2 bias.
      tile_hw: spatial tile width (lane dim); rounded to a multiple of 128.
    Returns:
      (N, C, H, W) output, same dtype as x.
    """
    N, C, H, W = x_nchw.shape
    F = w1.shape[0]
    HW = H * W

    # NCHW -> (N, C, HW): a pure reshape, no transpose / HBM shuffle.
    x3d = x_nchw.reshape(N, C, HW)

    # Lane-dense spatial tile, multiple of 128; pad the tail if needed.
    tile = min(tile_hw, _round_up(HW, 128))
    tile = _round_up(tile, 128)
    hw_pad = _round_up(HW, tile)
    if hw_pad != HW:
        x3d = jnp.pad(x3d, ((0, 0), (0, 0), (0, hw_pad - HW)))

    # Bias columns (broadcast over the lane/pixel axis), kept in f32.
    b1_k = b1.reshape(F, 1).astype(jnp.float32)
    b2_k = b2.reshape(C, 1).astype(jnp.float32)

    grid = (N, hw_pad // tile)

    # VMEM budget: double-buffered x/out tiles + resident weights + f32
    # intermediates; 2x margin, clipped to [4 MiB, 64 MiB] (v7x-safe).
    bpe_x = x3d.dtype.itemsize
    bpe_w = w1.dtype.itemsize
    vmem_needed = (2 * 2 * C * tile * bpe_x            # x + out, double-buffered
                   + 2 * F * C * bpe_w                 # w1, w2 resident
                   + (F + C) * 4                       # biases
                   + (F + C) * tile * 4)               # h / y intermediates (f32)
    vmem_limit = int(min(max(2 * vmem_needed, 4 << 20), 64 << 20))

    out3d = pl.pallas_call(
        _ffn_kernel,
        out_shape=jax.ShapeDtypeStruct((N, C, hw_pad), x3d.dtype),
        grid_spec=pltpu.PrefetchScalarGridSpec(
            num_scalar_prefetch=0,
            grid=grid,
            in_specs=[
                pl.BlockSpec((None, C, tile), lambda n, i: (n, 0, i)),  # x tile
                pl.BlockSpec((F, C), lambda n, i: (0, 0)),              # w1
                pl.BlockSpec((F, 1), lambda n, i: (0, 0)),              # b1
                pl.BlockSpec((C, F), lambda n, i: (0, 0)),              # w2
                pl.BlockSpec((C, 1), lambda n, i: (0, 0)),              # b2
            ],
            out_specs=pl.BlockSpec((None, C, tile), lambda n, i: (n, 0, i)),
        ),
        compiler_params=pltpu.CompilerParams(
            dimension_semantics=("parallel", "parallel"),
            vmem_limit_bytes=vmem_limit),
    )(x3d, w1, b1_k, w2, b2_k)

    if hw_pad != HW:
        out3d = out3d[:, :, :HW]
    return out3d.reshape(N, C, H, W)


def ffn_reference(x_nchw, w1, b1, w2, b2):
    """Plain-JAX reference (same math as the torch module in eval mode)."""
    xf = x_nchw.astype(jnp.float32)
    h = jnp.einsum('fc,nchw->nfhw', w1.astype(jnp.float32), xf)
    h = jnp.maximum(h + b1.astype(jnp.float32)[None, :, None, None], 0.0)
    y = jnp.einsum('cf,nfhw->nchw', w2.astype(jnp.float32), h)
    y = y + b2.astype(jnp.float32)[None, :, None, None]
    return (y + xf).astype(x_nchw.dtype)


if __name__ == "__main__":
    # Small shapes consistent with the module: embed_dims=32, ffn_channels=64.
    N, C, H, W = 2, 32, 16, 16        # H*W = 256 (multiple of 128)
    F = 64

    key = jax.random.PRNGKey(0)
    kx, k1, kb1, k2, kb2 = jax.random.split(key, 5)

    x = jax.random.normal(kx, (N, C, H, W), dtype=jnp.float32)
    # Deterministic synthetic parameters (xavier-ish scale).
    w1 = jax.random.normal(k1, (F, C), dtype=jnp.float32) * (1.0 / jnp.sqrt(C))
    b1 = jax.random.normal(kb1, (F,), dtype=jnp.float32) * 0.01
    w2 = jax.random.normal(k2, (C, F), dtype=jnp.float32) * (1.0 / jnp.sqrt(F))
    b2 = jax.random.normal(kb2, (C,), dtype=jnp.float32) * 0.01

    out = jax.block_until_ready(ffn_pallas(x, w1, b1, w2, b2))
    ref = ffn_reference(x, w1, b1, w2, b2)
    assert out.shape == (N, C, H, W)
    assert jnp.allclose(out, ref, atol=1e-4, rtol=1e-4), "mismatch vs reference"

    # Exercise the padded-tail path (H*W not a multiple of 128).
    x2 = jax.random.normal(kx, (1, C, 10, 10), dtype=jnp.float32)
    out2 = jax.block_until_ready(ffn_pallas(x2, w1, b1, w2, b2))
    ref2 = ffn_reference(x2, w1, b1, w2, b2)
    assert out2.shape == (1, C, 10, 10)
    assert jnp.allclose(out2, ref2, atol=1e-4, rtol=1e-4), "padded-tail mismatch"

    print("KERNEL_OK")
</pallas_src>

<mosaic_0001>
module attributes {stable_mosaic.version = 11 : i64} {
  func.func @_ffn_kernel(%arg0: i32, %arg1: i32, %arg2: memref<1x32x256xf32, #tpu.memory_space<vmem>>, %arg3: memref<64x32xf32, #tpu.memory_space<vmem>>, %arg4: memref<64x1xf32, #tpu.memory_space<vmem>>, %arg5: memref<32x64xf32, #tpu.memory_space<vmem>>, %arg6: memref<32x1xf32, #tpu.memory_space<vmem>>, %arg7: memref<1x32x256xf32, #tpu.memory_space<vmem>>) attributes {dimension_semantics = [#tpu.dimension_semantics<parallel>, #tpu.dimension_semantics<parallel>], iteration_bounds = array<i64: 2, 1>, scalar_prefetch = 0 : i64, scratch_operands = 0 : i64, tpu.core_type = #tpu.core_type<tc>, window_params = [{transform_indices = @transform_0, window_bounds = array<i64: 1, 32, 256>}, {pipeline_mode = #tpu.pipeline_mode<synchronous>, transform_indices = @transform_1, window_bounds = array<i64: 64, 32>}, {pipeline_mode = #tpu.pipeline_mode<synchronous>, transform_indices = @transform_2, window_bounds = array<i64: 64, 1>}, {pipeline_mode = #tpu.pipeline_mode<synchronous>, transform_indices = @transform_3, window_bounds = array<i64: 32, 64>}, {pipeline_mode = #tpu.pipeline_mode<synchronous>, transform_indices = @transform_4, window_bounds = array<i64: 32, 1>}, {transform_indices = @transform_5, window_bounds = array<i64: 1, 32, 256>}]} {
    %c0 = arith.constant 0 : index
    %c0_0 = arith.constant 0 : index
    %0 = vector.load %arg3[%c0, %c0_0] : memref<64x32xf32, #tpu.memory_space<vmem>>, vector<64x32xf32>
    %c0_1 = arith.constant 0 : index
    %c0_2 = arith.constant 0 : index
    %c0_3 = arith.constant 0 : index
    %1 = vector.load %arg2[%c0_1, %c0_2, %c0_3] : memref<1x32x256xf32, #tpu.memory_space<vmem>>, vector<1x32x256xf32>
    %2 = vector.shape_cast %1 : vector<1x32x256xf32> to vector<32x256xf32>
    %cst = arith.constant dense<0.000000e+00> : vector<64x256xf32>
    %3 = tpu.matmul %0, %2, %cst {dimension_numbers = #tpu.dot_dimension_numbers<[1], [0], [0], [1], [0, 0, 1, 1], [], []>} : vector<64x32xf32>, vector<32x256xf32>, vector<64x256xf32> -> vector<64x256xf32>
    %c0_4 = arith.constant 0 : index
    %c0_5 = arith.constant 0 : index
    %4 = vector.load %arg4[%c0_4, %c0_5] : memref<64x1xf32, #tpu.memory_space<vmem>>, vector<64x1xf32>
    %5 = vector.broadcast %4 : vector<64x1xf32> to vector<64x256xf32>
    %6 = arith.addf %3, %5 : vector<64x256xf32>
    %cst_6 = arith.constant 0.000000e+00 : f32
    %7 = vector.broadcast %cst_6 : f32 to vector<64x256xf32>
    %8 = arith.maximumf %6, %7 : vector<64x256xf32>
    %c0_7 = arith.constant 0 : index
    %c0_8 = arith.constant 0 : index
    %9 = vector.load %arg5[%c0_7, %c0_8] : memref<32x64xf32, #tpu.memory_space<vmem>>, vector<32x64xf32>
    %cst_9 = arith.constant dense<0.000000e+00> : vector<32x256xf32>
    %10 = tpu.matmul %9, %8, %cst_9 {dimension_numbers = #tpu.dot_dimension_numbers<[1], [0], [0], [1], [0, 0, 1, 1], [], []>} : vector<32x64xf32>, vector<64x256xf32>, vector<32x256xf32> -> vector<32x256xf32>
    %c0_10 = arith.constant 0 : index
    %c0_11 = arith.constant 0 : index
    %11 = vector.load %arg6[%c0_10, %c0_11] : memref<32x1xf32, #tpu.memory_space<vmem>>, vector<32x1xf32>
    %12 = vector.broadcast %11 : vector<32x1xf32> to vector<32x256xf32>
    %13 = arith.addf %10, %12 : vector<32x256xf32>
    %c0_12 = arith.constant 0 : index
    %c0_13 = arith.constant 0 : index
    %c0_14 = arith.constant 0 : index
    %14 = vector.load %arg2[%c0_12, %c0_13, %c0_14] : memref<1x32x256xf32, #tpu.memory_space<vmem>>, vector<1x32x256xf32>
    %15 = vector.shape_cast %14 : vector<1x32x256xf32> to vector<32x256xf32>
    %16 = arith.addf %13, %15 : vector<32x256xf32>
    %c0_15 = arith.constant 0 : index
    %c0_16 = arith.constant 0 : index
    %c0_17 = arith.constant 0 : index
    %17 = vector.load %arg7[%c0_15, %c0_16, %c0_17] : memref<1x32x256xf32, #tpu.memory_space<vmem>>, vector<1x32x256xf32>
    %18 = vector.shape_cast %17 : vector<1x32x256xf32> to vector<32x256xf32>
    %19 = vector.shape_cast %16 : vector<32x256xf32> to vector<1x32x256xf32>
    tpu.vector_store %arg7[%c0_15, %c0_16, %c0_17], %19 {strides = array<i32>} : memref<1x32x256xf32, #tpu.memory_space<vmem>>, vector<1x32x256xf32>,
    return
  }
  func.func @transform_0(%arg0: i32, %arg1: i32) -> (i32, i32, i32) {
    %c0_i32 = arith.constant 0 : i32
    %c0_i32_0 = arith.constant 0 : i32
    return %arg0, %c0_i32, %arg1 : i32, i32, i32
  }
  func.func @transform_1(%arg0: i32, %arg1: i32) -> (i32, i32) {
    %c0_i32 = arith.constant 0 : i32
    %c0_i32_0 = arith.constant 0 : i32
    %c0_i32_1 = arith.constant 0 : i32
    return %c0_i32, %c0_i32_0 : i32, i32
  }
  func.func @transform_2(%arg0: i32, %arg1: i32) -> (i32, i32) {
    %c0_i32 = arith.constant 0 : i32
    %c0_i32_0 = arith.constant 0 : i32
    %c0_i32_1 = arith.constant 0 : i32
    return %c0_i32, %c0_i32_0 : i32, i32
  }
  func.func @transform_3(%arg0: i32, %arg1: i32) -> (i32, i32) {
    %c0_i32 = arith.constant 0 : i32
    %c0_i32_0 = arith.constant 0 : i32
    %c0_i32_1 = arith.constant 0 : i32
    return %c0_i32, %c0_i32_0 : i32, i32
  }
  func.func @transform_4(%arg0: i32, %arg1: i32) -> (i32, i32) {
    %c0_i32 = arith.constant 0 : i32
    %c0_i32_0 = arith.constant 0 : i32
    %c0_i32_1 = arith.constant 0 : i32
    return %c0_i32, %c0_i32_0 : i32, i32
  }
  func.func @transform_5(%arg0: i32, %arg1: i32) -> (i32, i32, i32) {
    %c0_i32 = arith.constant 0 : i32
    %c0_i32_0 = arith.constant 0 : i32
    return %arg0, %c0_i32, %arg1 : i32, i32, i32
  }
}

</mosaic_0001>

<llo_original>
// kernel: tpu_custom_call.1
$region0: #{tpu_custom_call.1}
  #allocation0 [shape = 'u32[]', space=smem, size = 0x4, offset = 0x4, fixed_abs, tag = 'smem constant byte address 0x4 - core index']
  #allocation1 [shape = 'u32[144,128]{1,0:T(1,128)}', space=vmem, size = 0x12000, scoped, tag = 'internal scratch']
  %s0 = inlined_call_operand.vmem [shape: f32[2,32,256], index: 0, kind: input, shape index: {}]
  %s1 = inlined_call_operand.vmem [shape: f32[64,32], index: 1, kind: input, shape index: {}]
  %s2 = inlined_call_operand.vmem [shape: f32[64,1], index: 2, kind: input, shape index: {}]
  %s3 = inlined_call_operand.vmem [shape: f32[32,64], index: 3, kind: input, shape index: {}]
  %s4 = inlined_call_operand.vmem [shape: f32[32,1], index: 4, kind: input, shape index: {}]
  %s5 = inlined_call_operand.hbm [shape: f32[2,32,256], index: 5, kind: output, shape index: {}]
  %s6 = sld [smem:[#allocation0]]
  $region53: #{tpu_custom_call.1} parent=0
    _
  %s8 = ssub.s32 1, %s6
  %s9 = scalar_select 0, %s8, %s6
  $region1: #{tpu_custom_call.1} parent=0
    #allocation2 [shape = 'u8[65536]{0}', space=vmem, size = 0x10000, scoped, tag = 'output window, operand 0']
    #allocation3 [shape = 's32[2]{0}', space=sflag, size = 0x8, scoped, tag = 'scoped memory for tpu_custom_call.1']
    %10 = vsyncpa [#allocation3], 0
    %s11 = scalar_lea.sflag [#allocation3], 1
    %12 = vsyncpa %s11, 0
    loop: start=0, step=1, limit=4
    $region2: #{tpu_custom_call.1} parent=1 // loop_pre_header
      _
    $region3: #{tpu_custom_call.1} parent=1 // loop_header
      %s14 = sphi 0, %s18
      %p15 = scmp.ge.s32.totalorder %s14, 4
      %s21 = sphi 0, %s33
      %s22 = sphi 0, %s29
      %s23 = sphi 0, %s21
      %s24 = sphi 0, %s22
      %s25 = sphi 0, %s23
      %s26 = sphi 0, %s24
      %s38 = sphi 0, %s40
      %s41 = sphi 0, %s38
      %s42 = sphi 0, %s41
      %s58 = sphi 0, %s42
      %s62 = sphi 0, %s62
      %s64 = sphi 0, %s62
      %s65 = sphi 0, %s64
      %s79 = sphi 0, %s65
      %s83 = sphi 0, %s83
      %s85 = sphi 0, %s83
      %s86 = sphi 0, %s85
      %s100 = sphi 0, %s86
      %s104 = sphi 0, %s104
      %s106 = sphi 0, %s104
      %s107 = sphi 0, %s106
      %s121 = sphi 0, %s107
      %s125 = sphi 0, %s125
      %s127 = sphi 0, %s125
      %s128 = sphi 0, %s127
      %s142 = sphi 0, %s128
      %s150 = sphi 0, %s152
      %s153 = sphi 0, %s150
      %s154 = sphi 0, %s153
      %s170 = sphi 0, %s154
    $region4: #{tpu_custom_call.1} parent=1 // loop_header_branch
      %17 = sbr.rel (%p15) target = $region8
    $region5: #{tpu_custom_call.1} parent=1 // loop_body
      %s19 = ssub.s32 %s14, 1
      %s20 = ssub.s32 %s14, 2
      %s27 = sadd.s32 1, %s22
      %p28 = scmp.ge.s32.totalorder %s27, 1
      %s29 = scalar_select %p28, 0, %s27
      %s30 = sadd.s32 1, %s21
      %s31 = scalar_select %p28, %s30, %s21
      %p32 = scmp.ge.s32.totalorder %s31, 2
      %s33 = scalar_select %p32, 0, %s31
      %s34 = ssub.s32 %s21, %s33
      %s35 = ssub.s32 %s22, %s29
      %s36 = sor.u32 %s34, %s35
      %p37 = scmp.eq.s32.totalorder %s36, 0
      %s39 = sadd.s32 %s38, 1
      %s40 = scalar_select %p37, %s38, %s39
      %p43 = pneg %p37
      %p44 = scmp.eq.s32.totalorder %s14, 1
      %p45 = por %p43, %p44
      %p46 = scmp.ne.s32.totalorder %s38, %s41
      %p47 = scmp.eq.s32.totalorder %s14, 0
      %p48 = por %p46, %p47
      %p49 = scmp.ne.s32.totalorder %s38, %s41
      %p50 = scmp.eq.s32.totalorder %s19, 1
      %p51 = por %p49, %p50
      %p52 = scmp.ne.s32.totalorder %s41, %s42
      %p53 = scmp.eq.s32.totalorder %s19, 0
      %p54 = por %p52, %p53
      %p55 = scmp.ne.s32.totalorder %s41, %s42
      %p56 = scmp.eq.s32.totalorder %s20, 1
      %p57 = por %p55, %p56
      %p59 = scmp.ne.s32.totalorder %s42, %s58
      %p60 = scmp.eq.s32.totalorder %s20, 0
      %p61 = por %p59, %p60
      %s63 = sadd.s32 %s62, 1
      %p66 = scmp.eq.s32.totalorder %s14, 1
      %p67 = scmp.ne.s32.totalorder %s62, %s64
      %p68 = scmp.eq.s32.totalorder %s14, 0
      %p69 = por %p67, %p68
      %p70 = scmp.ne.s32.totalorder %s62, %s64
      %p71 = scmp.eq.s32.totalorder %s19, 1
      %p72 = por %p70, %p71
      %p73 = scmp.ne.s32.totalorder %s64, %s65
      %p74 = scmp.eq.s32.totalorder %s19, 0
      %p75 = por %p73, %p74
      %p76 = scmp.ne.s32.totalorder %s64, %s65
      %p77 = scmp.eq.s32.totalorder %s20, 1
      %p78 = por %p76, %p77
      %p80 = scmp.ne.s32.totalorder %s65, %s79
      %p81 = scmp.eq.s32.totalorder %s20, 0
      %p82 = por %p80, %p81
      %s84 = sadd.s32 %s83, 1
      %p87 = scmp.eq.s32.totalorder %s14, 1
      %p88 = scmp.ne.s32.totalorder %s83, %s85
      %p89 = scmp.eq.s32.totalorder %s14, 0
      %p90 = por %p88, %p89
      %p91 = scmp.ne.s32.totalorder %s83, %s85
      %p92 = scmp.eq.s32.totalorder %s19, 1
      %p93 = por %p91, %p92
      %p94 = scmp.ne.s32.totalorder %s85, %s86
      %p95 = scmp.eq.s32.totalorder %s19, 0
      %p96 = por %p94, %p95
      %p97 = scmp.ne.s32.totalorder %s85, %s86
      %p98 = scmp.eq.s32.totalorder %s20, 1
      %p99 = por %p97, %p98
      %p101 = scmp.ne.s32.totalorder %s86, %s100
      %p102 = scmp.eq.s32.totalorder %s20, 0
      %p103 = por %p101, %p102
      %s105 = sadd.s32 %s104, 1
      %p108 = scmp.eq.s32.totalorder %s14, 1
      %p109 = scmp.ne.s32.totalorder %s104, %s106
      %p110 = scmp.eq.s32.totalorder %s14, 0
      %p111 = por %p109, %p110
      %p112 = scmp.ne.s32.totalorder %s104, %s106
      %p113 = scmp.eq.s32.totalorder %s19, 1
      %p114 = por %p112, %p113
      %p115 = scmp.ne.s32.totalorder %s106, %s107
      %p116 = scmp.eq.s32.totalorder %s19, 0
      %p117 = por %p115, %p116
      %p118 = scmp.ne.s32.totalorder %s106, %s107
      %p119 = scmp.eq.s32.totalorder %s20, 1
      %p120 = por %p118, %p119
      %p122 = scmp.ne.s32.totalorder %s107, %s121
      %p123 = scmp.eq.s32.totalorder %s20, 0
      %p124 = por %p122, %p123
      %s126 = sadd.s32 %s125, 1
      %p129 = scmp.eq.s32.totalorder %s14, 1
      %p130 = scmp.ne.s32.totalorder %s125, %s127
      %p131 = scmp.eq.s32.totalorder %s14, 0
      %p132 = por %p130, %p131
      %p133 = scmp.ne.s32.totalorder %s125, %s127
      %p134 = scmp.eq.s32.totalorder %s19, 1
      %p135 = por %p133, %p134
      %p136 = scmp.ne.s32.totalorder %s127, %s128
      %p137 = scmp.eq.s32.totalorder %s19, 0
      %p138 = por %p136, %p137
      %p139 = scmp.ne.s32.totalorder %s127, %s128
      %p140 = scmp.eq.s32.totalorder %s20, 1
      %p141 = por %p139, %p140
      %p143 = scmp.ne.s32.totalorder %s128, %s142
      %p144 = scmp.eq.s32.totalorder %s20, 0
      %p145 = por %p143, %p144
      %s146 = ssub.s32 %s21, %s33
      %s147 = ssub.s32 %s22, %s29
      %s148 = sor.u32 %s146, %s147
      %p149 = scmp.eq.s32.totalorder %s148, 0
      %s151 = sadd.s32 %s150, 1
      %s152 = scalar_select %p149, %s150, %s151
      %p155 = pneg %p149
      %p156 = scmp.eq.s32.totalorder %s14, 1
      %p157 = por %p155, %p156
      %p158 = scmp.ne.s32.totalorder %s150, %s153
      %p159 = scmp.eq.s32.totalorder %s14, 0
      %p160 = por %p158, %p159
      %p161 = scmp.ne.s32.totalorder %s150, %s153
      %p162 = scmp.eq.s32.totalorder %s19, 1
      %p163 = por %p161, %p162
      %p164 = scmp.ne.s32.totalorder %s153, %s154
      %p165 = scmp.eq.s32.totalorder %s19, 0
      %p166 = por %p164, %p165
      %p167 = scmp.ne.s32.totalorder %s153, %s154
      %p168 = scmp.eq.s32.totalorder %s20, 1
      %p169 = por %p167, %p168
      %p171 = scmp.ne.s32.totalorder %s154, %s170
      %p172 = scmp.eq.s32.totalorder %s20, 0
      %p173 = por %p171, %p172
      %p174 = scmp.le.s32.totalorder 1, %s14
      %p175 = scmp.lt.s32.totalorder %s14, 3
      %p176 = pnand %p174, %p175
      %p177 = pneg %p176
      // Predicated region
      $region9: #{tpu_custom_call.1} parent=5 // pred_check
        _
      $region10: #{tpu_custom_call.1} parent=5 // pred_check_branch
        %179 = sbr.rel (%p176) target = $region12
      $region11: #{tpu_custom_call.1} parent=5 // pred_region
        %s180 = ssub.s32 %s14, 1
        // Predicated region
        $region13: #{tpu_custom_call.1} parent=11 // pred_check
          %p181 = pneg %p75
        $region14: #{tpu_custom_call.1} parent=11 // pred_check_branch
          %183 = sbr.rel (%p181) target = $region16
        $region15: #{tpu_custom_call.1} parent=11 // pred_region
          _
        $region16: #{tpu_custom_call.1} parent=11 // pred_fallthru
          _
        // Predicated region
        $region17: #{tpu_custom_call.1} parent=11 // pred_check
          %p184 = pneg %p96
        $region18: #{tpu_custom_call.1} parent=11 // pred_check_branch
          %186 = sbr.rel (%p184) target = $region20
        $region19: #{tpu_custom_call.1} parent=11 // pred_region
          _
        $region20: #{tpu_custom_call.1} parent=11 // pred_fallthru
          _
        // Predicated region
        $region21: #{tpu_custom_call.1} parent=11 // pred_check
          %p187 = pneg %p117
        $region22: #{tpu_custom_call.1} parent=11 // pred_check_branch
          %189 = sbr.rel (%p187) target = $region24
        $region23: #{tpu_custom_call.1} parent=11 // pred_region
          _
        $region24: #{tpu_custom_call.1} parent=11 // pred_fallthru
          _
        // Predicated region
        $region25: #{tpu_custom_call.1} parent=11 // pred_check
          %p190 = pneg %p138
        $region26: #{tpu_custom_call.1} parent=11 // pred_check_branch
          %192 = sbr.rel (%p190) target = $region28
        $region27: #{tpu_custom_call.1} parent=11 // pred_region
          _
        $region28: #{tpu_custom_call.1} parent=11 // pred_fallthru
          _
      $region12: #{tpu_custom_call.1} parent=5 // pred_fallthru
        _
      %p193 = scmp.lt.s32.totalorder %s14, 2
      // Predicated region
      $region29: #{tpu_custom_call.1} parent=5 // pred_check
        %p194 = pneg %p193
      $region30: #{tpu_custom_call.1} parent=5 // pred_check_branch
        %196 = sbr.rel (%p194) target = $region32
      $region31: #{tpu_custom_call.1} parent=5 // pred_region
        // Predicated region
        $region33: #{tpu_custom_call.1} parent=31 // pred_check
          %p197 = pneg %p48
        $region34: #{tpu_custom_call.1} parent=31 // pred_check_branch
          %199 = sbr.rel (%p197) target = $region36
        $region35: #{tpu_custom_call.1} parent=31 // pred_region
          %s200 = smul.u32 2, %s22
          %p201 = scmp.lt.s32.totalorder %s21, 1
          %s202 = scalar_select %p201, %s21, 1
          %p203 = scmp.lt.s32.totalorder %s200, 1
          %s204 = scalar_select %p203, %s200, 1
          %s205 = smul.addr %s202, 8
          %s206 = sadd.s32 %s204, %s205
          %s207 = smul.addr %s206, 8
          %s208 = scalar_lea.vmem %s0, %s207
          %s209 = smul.u32 2, %s22
        $region36: #{tpu_custom_call.1} parent=31 // pred_fallthru
          _
      $region32: #{tpu_custom_call.1} parent=5 // pred_fallthru
        _
      %p210 = scmp.le.s32.totalorder 1, %s14
      %p211 = scmp.lt.s32.totalorder %s14, 3
      %p212 = pnand %p210, %p211
      %p213 = pneg %p212
      // Predicated region
      $region37: #{tpu_custom_call.1} parent=5 // pred_check
        _
      $region38: #{tpu_custom_call.1} parent=5 // pred_check_branch
        %215 = sbr.rel (%p212) target = $region40
      $region39: #{tpu_custom_call.1} parent=5 // pred_region
        %s216 = ssub.s32 %s14, 1
        %s217 = smul.u32 2, %s24
        %p218 = scmp.lt.s32.totalorder %s23, 1
        %s219 = scalar_select %p218, %s23, 1
        %p220 = scmp.lt.s32.totalorder %s217, 1
        %s221 = scalar_select %p220, %s217, 1
        %s222 = smul.addr %s219, 8
        %s223 = sadd.s32 %s221, %s222
        %s224 = smul.addr %s223, 8
        %s225 = scalar_lea.vmem %s0, %s224
        %p226 = pneg %p54
        %p227 = pneg %p51
        %p228 = pneg %p75
        %p229 = pneg %p72
        %p230 = pneg %p96
        %p231 = pneg %p93
        %p232 = pneg %p117
        %p233 = pneg %p114
        %p234 = pneg %p138
        %p235 = pneg %p135
        %p236 = pneg %p166
        %p237 = pneg %p163
        %s238 = sand.u32 %s153, 1
        %s239 = scalar_lea.sflag [#allocation3], %s238
        %s240 = sand.u32 %s153, 1
        %s241 = smul.addr %s240, 64
        %s242 = scalar_lea.vmem [#allocation2], %s241
        %s243 = smul.u32 2, %s24
        %p244 = scmp.lt.s32.totalorder %s23, 1
        %s245 = scalar_select %p244, %s23, 1
        %p246 = scmp.lt.s32.totalorder %s243, 1
        %s247 = scalar_select %p246, %s243, 1
        %s248 = smul.addr %s245, 8
        %s249 = sadd.s32 %s247, %s248
        %s250 = smul.addr %s249, 8
        %s251 = scalar_lea.vmem %s0, %s250
        %s252 = smul.u32 2, %s24
        %s253 = smul.u32 2, %s24
        %v254 = vld [vmem:[%s1] sm:$0xff]
        %v255 = vld [vmem:[%s1 + $0x8] sm:$0xff]
        %v256 = vld [vmem:[%s1 + $0x10] sm:$0xff]
        %v257 = vld [vmem:[%s1 + $0x18] sm:$0xff]
        %v258 = vld [vmem:[%s1 + $0x20] sm:$0xff]
        %v259 = vld [vmem:[%s1 + $0x28] sm:$0xff]
        %v260 = vld [vmem:[%s1 + $0x30] sm:$0xff]
        %v261 = vld [vmem:[%s1 + $0x38] sm:$0xff]
        %v262 = vld [vmem:[%s251] sm:$0xff]
        %v263 = vld [vmem:[%s251 + $0x8] sm:$0xff]
        %v264 = vld [vmem:[%s251 + $0x10] sm:$0xff]
        %v265 = vld [vmem:[%s251 + $0x18] sm:$0xff]
        %v266 = vld [vmem:[%s251 + $0x20] sm:$0xff]
        %v267 = vld [vmem:[%s251 + $0x28] sm:$0xff]
        %v268 = vld [vmem:[%s251 + $0x30] sm:$0xff]
        %v269 = vld [vmem:[%s251 + $0x38] sm:$0xff]
        %v270 = vld [vmem:[%s2] sm:$0xff]
        %v271 = vld [vmem:[%s2 + $0x8] sm:$0xff]
        %v272 = vld [vmem:[%s2 + $0x10] sm:$0xff]
        %v273 = vld [vmem:[%s2 + $0x18] sm:$0xff]
        %v274 = vld [vmem:[%s2 + $0x20] sm:$0xff]
        %v275 = vld [vmem:[%s2 + $0x28] sm:$0xff]
        %v276 = vld [vmem:[%s2 + $0x30] sm:$0xff]
        %v277 = vld [vmem:[%s2 + $0x38] sm:$0xff]
        %279 = vset.pattern.permute.xlu0 0
        %280 = vperm.xlu0 %279, %v270
        %v281 = vpop.permute.xlu0 %280
        %284 = vset.pattern.permute.xlu0 0
        %285 = vperm.xlu0 %284, %v271
        %v286 = vpop.permute.xlu0 %285
        %289 = vset.pattern.permute.xlu0 0
        %290 = vperm.xlu0 %289, %v272
        %v291 = vpop.permute.xlu0 %290
        %294 = vset.pattern.permute.xlu0 0
        %295 = vperm.xlu0 %294, %v273
        %v296 = vpop.permute.xlu0 %295
        %299 = vset.pattern.permute.xlu0 0
        %300 = vperm.xlu0 %299, %v274
        %v301 = vpop.permute.xlu0 %300
        %304 = vset.pattern.permute.xlu0 0
        %305 = vperm.xlu0 %304, %v275
        %v306 = vpop.permute.xlu0 %305
        %309 = vset.pattern.permute.xlu0 0
        %310 = vperm.xlu0 %309, %v276
        %v311 = vpop.permute.xlu0 %310
        %314 = vset.pattern.permute.xlu0 0
        %315 = vperm.xlu0 %314, %v277
        %v316 = vpop.permute.xlu0 %315
        %vm318 = vcmask 261120
        %v320 = vsel %vm318, %v254, 0
        %v323 = vsel %vm318, %v255, 0
        %v326 = vsel %vm318, %v256, 0
        %v329 = vsel %vm318, %v257, 0
        %v332 = vsel %vm318, %v258, 0
        %v335 = vsel %vm318, %v259, 0
        %v338 = vsel %vm318, %v260, 0
        %v341 = vsel %vm318, %v261, 0
        %343 = vmatprep.subr.mxu0 0.0
        %344 = vmatpush1.msra.mxu0 0.0
        %345 = vmatprep.subr.mxu0 0.0
        %346 = vmatpush1.msra.mxu0 0.0
        %347 = vmatprep.subr.mxu0 0.0
        %348 = vmatpush1.msra.mxu0 0.0
        %349 = vmatprep.subr.mxu0 0.0
        %350 = vmatpush1.msra.mxu0 0.0
        %351 = vmatprep.subr.mxu0 0.0
        %352 = vmatpush1.msra.mxu0 0.0
        %353 = vmatprep.subr.mxu0 0.0
        %354 = vmatpush1.msra.mxu0 0.0
        %355 = vmatprep.subr.mxu0 0.0
        %356 = vmatpush1.msra.mxu0 0.0
        %357 = vmatprep.subr.mxu0 0.0
        %358 = vmatpush1.msra.mxu0 0.0
        %359 = vmatprep.subr.mxu0 0.0
        %360 = vmatpush1.msra.mxu0 0.0
        %361 = vmatprep.subr.mxu0 0.0
        %362 = vmatpush1.msra.mxu0 0.0
        %363 = vmatprep.subr.mxu0 0.0
        %364 = vmatpush1.msra.mxu0 0.0
        %365 = vmatprep.subr.mxu0 0.0
        %366 = vmatpush1.msra.mxu0 0.0
        %367 = vmatprep.subr.mxu0 %v269
        %368 = vmatpush1.msra.mxu0 %v268
        %369 = vmatprep.subr.mxu0 %v267
        %370 = vmatpush1.msra.mxu0 %v266
        %371 = vmatprep.subr.mxu0 %v265
        %372 = vmatpush1.msra.mxu0 %v264
        %373 = vmatprep.subr.mxu0 %v263
        %374 = vmatpush1.msra.mxu0 %v262
        %375 = vmatprep.subr.mxu0 0.0
        %376 = vmatpush2.msra.mxu0 0.0
        %377 = vmatprep.subr.mxu0 0.0
        %378 = vmatpush2.msra.mxu0 0.0
        %379 = vmatprep.subr.mxu0 0.0
        %380 = vmatpush2.msra.mxu0 0.0
        %381 = vmatprep.subr.mxu0 0.0
        %382 = vmatpush2.msra.mxu0 0.0
        %383 = vmatprep.subr.mxu0 0.0
        %384 = vmatpush2.msra.mxu0 0.0
        %385 = vmatprep.subr.mxu0 0.0
        %386 = vmatpush2.msra.mxu0 0.0
        %387 = vmatprep.subr.mxu0 0.0
        %388 = vmatpush2.msra.mxu0 0.0
        %389 = vmatprep.subr.mxu0 0.0
        %390 = vmatpush2.msra.mxu0 0.0
        %391 = vmatprep.subr.mxu0 0.0
        %392 = vmatpush2.msra.mxu0 0.0
        %393 = vmatprep.subr.mxu0 0.0
        %394 = vmatpush2.msra.mxu0 0.0
        %395 = vmatprep.subr.mxu0 0.0
        %396 = vmatpush2.msra.mxu0 0.0
        %397 = vmatprep.subr.mxu0 0.0
        %398 = vmatpush2.msra.mxu0 0.0
        %399 = vmatprep.subr.mxu0 0.0
        %400 = vmatpush2.msra.mxu0 0.0
        %401 = vmatprep.subr.mxu0 0.0
        %402 = vmatpush2.msra.mxu0 0.0
        %403 = vmatprep.subr.mxu0 0.0
        %404 = vmatpush2.msra.mxu0 0.0
        %405 = vmatprep.subr.mxu0 0.0
        %406 = vmatpush2.msra.mxu0 0.0
        %407 = vmatprep.mubr.f32.mxu0 0.0
        %408 = vmatmul.mubr.f32.gmra.mxu0 %v320
        %v409 = vpop.f32.mrf.mxu0
        %v410 = vadd.f32 %v281, %v409
        %v411 = vpop.f32.mrf.mxu0
        %v412 = vadd.f32 %v281, %v411
        %413 = vmatprep.mubr.f32.mxu0 0.0
        %414 = vmatmul.mubr.f32.gmra.mxu0 %v323
        %v415 = vpop.f32.mrf.mxu0
        %v416 = vadd.f32 %v286, %v415
        %v417 = vpop.f32.mrf.mxu0
        %v418 = vadd.f32 %v286, %v417
        %419 = vmatprep.mubr.f32.mxu0 0.0
        %420 = vmatmul.mubr.f32.gmra.mxu0 %v326
        %v421 = vpop.f32.mrf.mxu0
        %v422 = vadd.f32 %v291, %v421
        %v423 = vpop.f32.mrf.mxu0
        %v424 = vadd.f32 %v291, %v423
        %425 = vmatprep.mubr.f32.mxu0 0.0
        %426 = vmatmul.mubr.f32.gmra.mxu0 %v329
        %v427 = vpop.f32.mrf.mxu0
        %v428 = vadd.f32 %v296, %v427
        %v429 = vpop.f32.mrf.mxu0
        %v430 = vadd.f32 %v296, %v429
        %431 = vmatprep.mubr.f32.mxu0 0.0
        %432 = vmatmul.mubr.f32.gmra.mxu0 %v332
        %v433 = vpop.f32.mrf.mxu0
        %v434 = vadd.f32 %v301, %v433
        %v435 = vpop.f32.mrf.mxu0
        %v436 = vadd.f32 %v301, %v435
        %437 = vmatprep.mubr.f32.mxu0 0.0
        %438 = vmatmul.mubr.f32.gmra.mxu0 %v335
        %v439 = vpop.f32.mrf.mxu0
        %v440 = vadd.f32 %v306, %v439
        %v441 = vpop.f32.mrf.mxu0
        %v442 = vadd.f32 %v306, %v441
        %443 = vmatprep.mubr.f32.mxu0 0.0
        %444 = vmatmul.mubr.f32.gmra.mxu0 %v338
        %v445 = vpop.f32.mrf.mxu0
        %v446 = vadd.f32 %v311, %v445
        %v447 = vpop.f32.mrf.mxu0
        %v448 = vadd.f32 %v311, %v447
        %449 = vmatprep.mubr.f32.mxu0 0.0
        %450 = vmatmul.mubr.f32.gmra.mxu0 %v341
        %v451 = vpop.f32.mrf.mxu0
        %v452 = vadd.f32 %v316, %v451
        %v453 = vpop.f32.mrf.mxu0
        %v454 = vadd.f32 %v316, %v453
        %455 = vdwg.mxu0
        %v456 = vmax.f32 %v410, 0.0
        %v457 = vmax.f32 %v412, 0.0
        %v458 = vmax.f32 %v416, 0.0
        %v459 = vmax.f32 %v418, 0.0
        %v460 = vmax.f32 %v422, 0.0
        %v461 = vmax.f32 %v424, 0.0
        %v462 = vmax.f32 %v428, 0.0
        %v463 = vmax.f32 %v430, 0.0
        %v464 = vmax.f32 %v434, 0.0
        %v465 = vmax.f32 %v436, 0.0
        %v466 = vmax.f32 %v440, 0.0
        %v467 = vmax.f32 %v442, 0.0
        %v468 = vmax.f32 %v446, 0.0
        %v469 = vmax.f32 %v448, 0.0
        %v470 = vmax.f32 %v452, 0.0
        %v471 = vmax.f32 %v454, 0.0
        %v472 = vld [vmem:[%s3] sm:$0xff]
        %v473 = vld [vmem:[%s3 + $0x8] sm:$0xff]
        %v474 = vld [vmem:[%s3 + $0x10] sm:$0xff]
        %v475 = vld [vmem:[%s3 + $0x18] sm:$0xff]
        %v476 = vld [vmem:[%s4] sm:$0xff]
        %v477 = vld [vmem:[%s4 + $0x8] sm:$0xff]
        %v478 = vld [vmem:[%s4 + $0x10] sm:$0xff]
        %v479 = vld [vmem:[%s4 + $0x18] sm:$0xff]
        %481 = vset.pattern.permute.xlu0 0
        %482 = vperm.xlu0 %481, %v476
        %v483 = vpop.permute.xlu0 %482
        %486 = vset.pattern.permute.xlu0 0
        %487 = vperm.xlu0 %486, %v477
        %v488 = vpop.permute.xlu0 %487
        %491 = vset.pattern.permute.xlu0 0
        %492 = vperm.xlu0 %491, %v478
        %v493 = vpop.permute.xlu0 %492
        %496 = vset.pattern.permute.xlu0 0
        %497 = vperm.xlu0 %496, %v479
        %v498 = vpop.permute.xlu0 %497
        %vm500 = vcmask 523264
        %v502 = vsel %vm500, %v472, 0
        %v505 = vsel %vm500, %v473, 0
        %v508 = vsel %vm500, %v474, 0
        %v511 = vsel %vm500, %v475, 0
        %513 = vmatprep.subr.mxu0 0.0
        %514 = vmatpush1.msra.mxu0 0.0
        %515 = vmatprep.subr.mxu0 0.0
        %516 = vmatpush1.msra.mxu0 0.0
        %517 = vmatprep.subr.mxu0 0.0
        %518 = vmatpush1.msra.mxu0 0.0
        %519 = vmatprep.subr.mxu0 0.0
        %520 = vmatpush1.msra.mxu0 0.0
        %521 = vmatprep.subr.mxu0 0.0
        %522 = vmatpush1.msra.mxu0 0.0
        %523 = vmatprep.subr.mxu0 0.0
        %524 = vmatpush1.msra.mxu0 0.0
        %525 = vmatprep.subr.mxu0 0.0
        %526 = vmatpush1.msra.mxu0 0.0
        %527 = vmatprep.subr.mxu0 0.0
        %528 = vmatpush1.msra.mxu0 0.0
        %529 = vmatprep.subr.mxu0 %v471
        %530 = vmatpush1.msra.mxu0 %v470
        %531 = vmatprep.subr.mxu0 %v469
        %532 = vmatpush1.msra.mxu0 %v468
        %533 = vmatprep.subr.mxu0 %v467
        %534 = vmatpush1.msra.mxu0 %v466
        %535 = vmatprep.subr.mxu0 %v465
        %536 = vmatpush1.msra.mxu0 %v464
        %537 = vmatprep.subr.mxu0 %v463
        %538 = vmatpush1.msra.mxu0 %v462
        %539 = vmatprep.subr.mxu0 %v461
        %540 = vmatpush1.msra.mxu0 %v460
        %541 = vmatprep.subr.mxu0 %v459
        %542 = vmatpush1.msra.mxu0 %v458
        %543 = vmatprep.subr.mxu0 %v457
        %544 = vmatpush1.msra.mxu0 %v456
        %545 = vmatprep.subr.mxu0 0.0
        %546 = vmatpush2.msra.mxu0 0.0
        %547 = vmatprep.subr.mxu0 0.0
        %548 = vmatpush2.msra.mxu0 0.0
        %549 = vmatprep.subr.mxu0 0.0
        %550 = vmatpush2.msra.mxu0 0.0
        %551 = vmatprep.subr.mxu0 0.0
        %552 = vmatpush2.msra.mxu0 0.0
        %553 = vmatprep.subr.mxu0 0.0
        %554 = vmatpush2.msra.mxu0 0.0
        %555 = vmatprep.subr.mxu0 0.0
        %556 = vmatpush2.msra.mxu0 0.0
        %557 = vmatprep.subr.mxu0 0.0
        %558 = vmatpush2.msra.mxu0 0.0
        %559 = vmatprep.subr.mxu0 0.0
        %560 = vmatpush2.msra.mxu0 0.0
        %561 = vmatprep.subr.mxu0 0.0
        %562 = vmatpush2.msra.mxu0 0.0
        %563 = vmatprep.subr.mxu0 0.0
        %564 = vmatpush2.msra.mxu0 0.0
        %565 = vmatprep.subr.mxu0 0.0
        %566 = vmatpush2.msra.mxu0 0.0
        %567 = vmatprep.subr.mxu0 0.0
        %568 = vmatpush2.msra.mxu0 0.0
        %569 = vmatprep.subr.mxu0 0.0
        %570 = vmatpush2.msra.mxu0 0.0
        %571 = vmatprep.subr.mxu0 0.0
        %572 = vmatpush2.msra.mxu0 0.0
        %573 = vmatprep.subr.mxu0 0.0
        %574 = vmatpush2.msra.mxu0 0.0
        %575 = vmatprep.subr.mxu0 0.0
        %576 = vmatpush2.msra.mxu0 0.0
        %577 = vmatprep.mubr.f32.mxu0 0.0
        %578 = vmatmul.mubr.f32.gmra.mxu0 %v502
        %v579 = vpop.f32.mrf.mxu0
        %v580 = vadd.f32 %v483, %v579
        %v581 = vpop.f32.mrf.mxu0
        %v582 = vadd.f32 %v483, %v581
        %583 = vmatprep.mubr.f32.mxu0 0.0
        %584 = vmatmul.mubr.f32.gmra.mxu0 %v505
        %v585 = vpop.f32.mrf.mxu0
        %v586 = vadd.f32 %v488, %v585
        %v587 = vpop.f32.mrf.mxu0
        %v588 = vadd.f32 %v488, %v587
        %589 = vmatprep.mubr.f32.mxu0 0.0
        %590 = vmatmul.mubr.f32.gmra.mxu0 %v508
        %v591 = vpop.f32.mrf.mxu0
        %v592 = vadd.f32 %v493, %v591
        %v593 = vpop.f32.mrf.mxu0
        %v594 = vadd.f32 %v493, %v593
        %595 = vmatprep.mubr.f32.mxu0 0.0
        %596 = vmatmul.mubr.f32.gmra.mxu0 %v511
        %v597 = vpop.f32.mrf.mxu0
        %v598 = vadd.f32 %v498, %v597
        %v599 = vpop.f32.mrf.mxu0
        %v600 = vadd.f32 %v498, %v599
        %601 = vdwg.mxu0
        %v602 = vadd.f32 %v580, %v262
        %v603 = vadd.f32 %v582, %v263
        %v604 = vadd.f32 %v586, %v264
        %v605 = vadd.f32 %v588, %v265
        %v606 = vadd.f32 %v592, %v266
        %v607 = vadd.f32 %v594, %v267
        %v608 = vadd.f32 %v598, %v268
        %v609 = vadd.f32 %v600, %v269
        %610 = vst [vmem:[%s242] sm:$0xff] %v602
        %611 = vst [vmem:[%s242 + $0x8] sm:$0xff] %v603
        %612 = vst [vmem:[%s242 + $0x10] sm:$0xff] %v604
        %613 = vst [vmem:[%s242 + $0x18] sm:$0xff] %v605
        %614 = vst [vmem:[%s242 + $0x20] sm:$0xff] %v606
        %615 = vst [vmem:[%s242 + $0x28] sm:$0xff] %v607
        %616 = vst [vmem:[%s242 + $0x30] sm:$0xff] %v608
        %617 = vst [vmem:[%s242 + $0x38] sm:$0xff] %v609
        %s618 = sand.u32 %s153, 1
        %s619 = scalar_lea.sflag [#allocation3], %s618
        %s620 = sand.u32 %s153, 1
        %s621 = smul.addr %s620, 64
        %s622 = scalar_lea.vmem [#allocation2], %s621
        // Predicated region
        $region41: #{tpu_custom_call.1} parent=39 // pred_check
          %p623 = pneg %p163
        $region42: #{tpu_custom_call.1} parent=39 // pred_check_branch
          %625 = sbr.rel (%p623) target = $region44
        $region43: #{tpu_custom_call.1} parent=39 // pred_region
          %s626 = smul.u32 2, %s24
          %s628 = ssub.s32 1024, 1024
          %629 = vsyncadd %s619, %s628
          %s630 = smul.addr %s23, 8
          %s631 = sadd.s32 %s626, %s630
          %s632 = smul.addr %s631, 128
          %s633 = scalar_lea.hbm %s5, %s632
          %s634 = sshll.u32 %s622, 4
          %s635 = int_to_ptr.vmem [resolvable:$true] %s634
          %640 = dma.vmem_to_hbm [thread:$0]  %s635, 1024, %s633, %s619, 256, 256, 16
        $region44: #{tpu_custom_call.1} parent=39 // pred_fallthru
          _
      $region40: #{tpu_custom_call.1} parent=5 // pred_fallthru
        _
      %p641 = scmp.le.s32.totalorder 2, %s14
      // Predicated region
      $region45: #{tpu_custom_call.1} parent=5 // pred_check
        %p642 = pneg %p641
      $region46: #{tpu_custom_call.1} parent=5 // pred_check_branch
        %644 = sbr.rel (%p642) target = $region48
      $region47: #{tpu_custom_call.1} parent=5 // pred_region
        %s645 = ssub.s32 %s14, 2
        // Predicated region
        $region49: #{tpu_custom_call.1} parent=47 // pred_check
          %p646 = pneg %p169
        $region50: #{tpu_custom_call.1} parent=47 // pred_check_branch
          %648 = sbr.rel (%p646) target = $region52
        $region51: #{tpu_custom_call.1} parent=47 // pred_region
          %s649 = sand.u32 %s154, 1
          %s650 = scalar_lea.sflag [#allocation3], %s649
          %s651 = sand.u32 %s154, 1
          %s652 = smul.addr %s651, 64
          %s653 = scalar_lea.vmem [#allocation2], %s652
          %654 = dma.done %s650, 1024
        $region52: #{tpu_custom_call.1} parent=47 // pred_fallthru
          _
      $region48: #{tpu_custom_call.1} parent=5 // pred_fallthru
        _
    $region6: #{tpu_custom_call.1} parent=1 // loop_footer
      %s18 = sadd.s32 1, %s14
    $region7: #{tpu_custom_call.1} parent=1 // loop_footer_branch
      %13 = sbr.rel target = $region3
    $region8: #{tpu_custom_call.1} parent=1 // loop_exit
      _
    %655 = vsyncpa [#allocation3], 1
    %s656 = scalar_lea.sflag [#allocation3], 1
    %657 = vsyncpa %s656, 1

</llo_original>
